<compile_context>
chip_gen: v7x
topology: tpu7x:2x2x1
jax: 0.10.0
libtpu: 0.0.40
codegen_flags: <defaults>
</compile_context>

<pallas_src>
import math
from functools import partial

import jax
import jax.numpy as jnp
import numpy as np
from jax.experimental import pallas as pl
from jax.experimental.pallas import tpu as pltpu


def _round_up(x, m):
    return ((x + m - 1) // m) * m


# ------------------------------ Pallas kernel --------------------------------
def _actor_kernel(
    in_ref,                                           # (feat_pad, tb): [x | state | noise | pad]
    wm_ref, bm_ref, gt_ref, bet_ref,                  # merged first layer + trunk LayerNorm
    ws2_ref, bs2_ref, gs_ref, bes_ref,                # state-encoder 2nd Linear + LayerNorm
    w1_ref, b1_ref, w2_ref, b2_ref, w3_ref, b3_ref,   # policy MLP
    out_ref,                                          # (16, tb): [mu | pi | log_std | log_pi]
    *, action_dim, proj_dim, noise_row, log_std_min, log_std_max,
):
    f32 = jnp.float32
    bf16 = jnp.bfloat16

    full = in_ref[...].astype(f32)                    # (feat_pad, tb), batch on lanes
    noise = full[noise_row:noise_row + action_dim]    # (A, tb), stays f32

    def mm(w_ref, h):
        # MXU in its native bf16, f32 accumulation.
        return jnp.dot(w_ref[...], h.astype(bf16), preferred_element_type=f32)

    def ln_tanh(h, g_ref, b_ref, eps=1e-5):
        mean = jnp.mean(h, axis=0, keepdims=True)
        c = h - mean
        var = jnp.mean(c * c, axis=0, keepdims=True)
        return jnp.tanh(c * jax.lax.rsqrt(var + eps) * g_ref[...] + b_ref[...])

    # merged block-diagonal first layer: [trunk Linear ; state-enc Linear-1]
    h01 = mm(wm_ref, full) + bm_ref[...]              # (proj + Hs, tb)
    trunk = ln_tanh(h01[:proj_dim], gt_ref, bet_ref)  # Linear -> LayerNorm -> Tanh
    s_hid = jnp.maximum(h01[proj_dim:], 0.0)          # ReLU
    s_enc = ln_tanh(mm(ws2_ref, s_hid) + bs2_ref[...], gs_ref, bes_ref)
    h = trunk + s_enc

    # policy MLP: Linear -> ReLU -> Linear -> ReLU -> Linear
    a = jnp.maximum(mm(w1_ref, h) + b1_ref[...], 0.0)
    a = jnp.maximum(mm(w2_ref, a) + b2_ref[...], 0.0)
    out = mm(w3_ref, a) + b3_ref[...]                 # (2A, tb)

    mu = out[:action_dim]
    log_std = jnp.tanh(out[action_dim:])
    log_std = log_std_min + 0.5 * (log_std_max - log_std_min) * (log_std + 1.0)

    # compute_pi=True path: pi = mu + noise * std (noise supplied host-side)
    std = jnp.exp(log_std)
    pi_pre = mu + noise * std

    # compute_log_pi=True path: Gaussian log-prob of pre-squash sample
    log_pi = jnp.sum(-0.5 * noise * noise - log_std, axis=0, keepdims=True)
    log_pi = log_pi - 0.5 * math.log(2.0 * math.pi) * action_dim

    # squash (tanh) + log-det-Jacobian correction (same formula as the module)
    mu_t = jnp.tanh(mu)
    pi_t = jnp.tanh(pi_pre)
    log_pi = log_pi - jnp.sum(
        jnp.log(jnp.maximum(1.0 - pi_t * pi_t, 0.0) + 1e-6), axis=0, keepdims=True)

    # single lane-dense packed store (log_pi broadcast fills the pad rows)
    tb = pi_t.shape[1]
    rem = out_ref.shape[0] - 3 * action_dim
    packed = jnp.concatenate(
        [mu_t, pi_t, log_std, jnp.broadcast_to(log_pi, (rem, tb))], axis=0)
    out_ref[...] = packed.astype(out_ref.dtype)


# --------------------------------- wrapper -----------------------------------
def efficient_actor_forward(x, state, noise, params, *,
                            log_std_min, log_std_max, tb_max=512):
    """x: (B, out_dim), state: (B, state_dim), noise: (B, action_dim).
       Returns (mu, pi, log_pi, log_std) matching EfficientActor.forward with
       compute_pi=compute_log_pi=True (noise passed explicitly)."""
    B, out_dim = x.shape
    state_dim = state.shape[1]
    action_dim = noise.shape[1]
    proj_dim = params["wt"].shape[0]          # torch layout (out, in)
    hdim_state = params["ws1"].shape[0]
    hidden_dim = params["w1"].shape[0]

    # lane-dense batch tile: multiple of 128, <= 512; for B >= 256 force >= 2 grid
    # steps so the "parallel" axis can shard across v7x's two TensorCores.
    tb = _round_up(B, 128)
    if B >= 256:
        tb = min(tb, _round_up((B + 1) // 2, 128))
    tb = min(tb, tb_max)
    B_pad = _round_up(B, tb)
    grid = (B_pad // tb,)

    # feature-major packed input slab: rows = [x | state | noise | zero pad]
    feat = out_dim + state_dim + action_dim
    feat_pad = _round_up(feat, 8)
    slab = jnp.concatenate([x, state, noise], axis=1).astype(jnp.float32)
    slab = jnp.pad(slab, ((0, B_pad - B), (0, feat_pad - feat))).T   # (feat_pad, B_pad)

    # merged block-diagonal first-layer weight (trunk + state-encoder Linear-1)
    wm = jnp.zeros((proj_dim + hdim_state, feat_pad), jnp.float32)
    wm = wm.at[:proj_dim, :out_dim].set(params["wt"])
    wm = wm.at[proj_dim:, out_dim:out_dim + state_dim].set(params["ws1"])
    bm = jnp.concatenate([params["bt"], params["bs1"]], axis=0)      # (proj+Hs, 1)

    bf16 = jnp.bfloat16
    param_arrays = [
        wm.astype(bf16), bm, params["gt"], params["bet"],
        params["ws2"].astype(bf16), params["bs2"], params["gs"], params["bes"],
        params["w1"].astype(bf16), params["b1"],
        params["w2"].astype(bf16), params["b2"],
        params["w3"].astype(bf16), params["b3"],
    ]

    out_rows_pad = _round_up(3 * action_dim + 1, 8)

    in_specs = [pl.BlockSpec((feat_pad, tb), lambda i: (0, i))]
    in_specs += [pl.BlockSpec(a.shape, lambda i: (0, 0)) for a in param_arrays]
    out_specs = pl.BlockSpec((out_rows_pad, tb), lambda i: (0, i))
    out_shape = jax.ShapeDtypeStruct((out_rows_pad, B_pad), jnp.float32)

    # advisory cost hint for XLA's scheduler
    flops_per_col = 2 * ((proj_dim + hdim_state) * feat_pad
                         + proj_dim * hdim_state
                         + hidden_dim * proj_dim + hidden_dim * hidden_dim
                         + 2 * action_dim * hidden_dim)
    transc_per_col = 2 * proj_dim + 5 * action_dim + 2
    bytes_accessed = (4 * (int(slab.size) + out_rows_pad * B_pad)
                      + sum(int(a.size) * a.dtype.itemsize for a in param_arrays))
    cost = pl.CostEstimate(flops=int(B_pad * flops_per_col),
                           transcendentals=int(B_pad * transc_per_col),
                           bytes_accessed=int(bytes_accessed))

    kernel = partial(_actor_kernel,
                     action_dim=action_dim, proj_dim=proj_dim,
                     noise_row=out_dim + state_dim,
                     log_std_min=float(log_std_min),
                     log_std_max=float(log_std_max))

    packed = pl.pallas_call(
        kernel,
        out_shape=out_shape,
        grid_spec=pltpu.PrefetchScalarGridSpec(
            num_scalar_prefetch=0, grid=grid,
            in_specs=in_specs, out_specs=out_specs),
        compiler_params=pltpu.CompilerParams(
            dimension_semantics=("parallel",)),
        cost_estimate=cost,
    )(slab, *param_arrays)

    A = action_dim
    mu = packed[:A, :B].T.astype(x.dtype)
    pi = packed[A:2 * A, :B].T.astype(x.dtype)
    log_std = packed[2 * A:3 * A, :B].T
    log_pi = packed[3 * A:3 * A + 1, :B].T
    return mu, pi, log_pi, log_std


# ----------------------- deterministic parameter init ------------------------
def _orthogonal(key, rows, cols, gain=1.0):
    """torch.nn.init.orthogonal_ equivalent for a (rows, cols) matrix."""
    a = np.asarray(jax.random.normal(key, (max(rows, cols), min(rows, cols)),
                                     jnp.float32))
    q, r = np.linalg.qr(a)
    q = q * np.sign(np.diag(r))[None, :]
    if rows < cols:
        q = q.T
    return jnp.asarray(gain * q[:rows, :cols], dtype=jnp.float32)


def _linear_params(key, in_dim, out_dim):
    # PyTorch Linear: weight (out, in) orthogonal-init, bias zero (as column).
    return _orthogonal(key, out_dim, in_dim), jnp.zeros((out_dim, 1), jnp.float32)


# ------------------------------ JAX reference ---------------------------------
def _reference_forward(x, state, noise, p, log_std_min, log_std_max):
    def lin(h, w, b):                      # torch-layout weight (out, in), bias (out, 1)
        return h @ w.T + b.T

    def ln(h, g, b, eps=1e-5):
        mean = jnp.mean(h, -1, keepdims=True)
        var = jnp.mean((h - mean) ** 2, -1, keepdims=True)
        return (h - mean) / jnp.sqrt(var + eps) * g.T + b.T

    h = jnp.tanh(ln(lin(x, p["wt"], p["bt"]), p["gt"], p["bet"]))
    hs = jnp.maximum(lin(state, p["ws1"], p["bs1"]), 0.0)
    hs = jnp.tanh(ln(lin(hs, p["ws2"], p["bs2"]), p["gs"], p["bes"]))
    h = h + hs
    a = jnp.maximum(lin(h, p["w1"], p["b1"]), 0.0)
    a = jnp.maximum(lin(a, p["w2"], p["b2"]), 0.0)
    out = lin(a, p["w3"], p["b3"])
    A = noise.shape[1]
    mu, log_std = out[:, :A], out[:, A:]
    log_std = jnp.tanh(log_std)
    log_std = log_std_min + 0.5 * (log_std_max - log_std_min) * (log_std + 1.0)
    pi = mu + noise * jnp.exp(log_std)
    log_pi = (jnp.sum(-0.5 * noise ** 2 - log_std, -1, keepdims=True)
              - 0.5 * math.log(2.0 * math.pi) * A)
    mu = jnp.tanh(mu)
    pi = jnp.tanh(pi)
    log_pi = log_pi - jnp.sum(
        jnp.log(jnp.maximum(1.0 - pi ** 2, 0.0) + 1e-6), -1, keepdims=True)
    return mu, pi, log_pi, log_std


# ----------------------------------- main -------------------------------------
if __name__ == "__main__":
    # EfficientActor config (small, consistent with the module's forward):
    B = 2
    out_dim = 32           # feature input dim
    projection_dim = 32
    state_dim = 8          # state_shape = (8,)
    action_dim = 4         # action_shape = (4,)
    hidden_dim = 32
    hidden_dim_state = 32
    log_std_min, log_std_max = -10.0, 2.0

    key = jax.random.PRNGKey(0)
    keys = jax.random.split(key, 10)

    x = jax.random.normal(keys[0], (B, out_dim), jnp.float32)
    state = jax.random.normal(keys[1], (B, state_dim), jnp.float32)
    # TODO(synk): torch.randn_like(mu) is drawn inside forward(); the Gaussian
    # noise is sampled host-side here and passed into the kernel instead.
    noise = jax.random.normal(keys[2], (B, action_dim), jnp.float32)

    params = {}
    params["wt"], params["bt"] = _linear_params(keys[3], out_dim, projection_dim)
    params["gt"] = jnp.ones((projection_dim, 1), jnp.float32)
    params["bet"] = jnp.zeros((projection_dim, 1), jnp.float32)
    params["ws1"], params["bs1"] = _linear_params(keys[4], state_dim, hidden_dim_state)
    params["ws2"], params["bs2"] = _linear_params(keys[5], hidden_dim_state, projection_dim)
    params["gs"] = jnp.ones((projection_dim, 1), jnp.float32)
    params["bes"] = jnp.zeros((projection_dim, 1), jnp.float32)
    params["w1"], params["b1"] = _linear_params(keys[6], projection_dim, hidden_dim)
    params["w2"], params["b2"] = _linear_params(keys[7], hidden_dim, hidden_dim)
    params["w3"], params["b3"] = _linear_params(keys[8], hidden_dim, 2 * action_dim)

    mu, pi, log_pi, log_std = efficient_actor_forward(
        x, state, noise, params,
        log_std_min=log_std_min, log_std_max=log_std_max)
    mu, pi, log_pi, log_std = jax.block_until_ready((mu, pi, log_pi, log_std))

    # correctness check against a plain-JAX f32 reference
    r_mu, r_pi, r_log_pi, r_log_std = _reference_forward(
        x, state, noise, params, log_std_min, log_std_max)

    # kernel feeds the MXU with bf16 operands -> loosened tolerances vs f32 ref
    np.testing.assert_allclose(np.asarray(mu), np.asarray(r_mu), rtol=2e-2, atol=2e-2)
    np.testing.assert_allclose(np.asarray(pi), np.asarray(r_pi), rtol=2e-2, atol=2e-2)
    np.testing.assert_allclose(np.asarray(log_std), np.asarray(r_log_std), rtol=2e-2, atol=5e-2)
    np.testing.assert_allclose(np.asarray(log_pi), np.asarray(r_log_pi), rtol=5e-2, atol=2e-1)

    assert mu.shape == (B, action_dim) and pi.shape == (B, action_dim)
    assert log_pi.shape == (B, 1) and log_std.shape == (B, action_dim)
    print("KERNEL_OK")
</pallas_src>

<mosaic_0001>
module attributes {stable_mosaic.version = 11 : i64} {
  func.func @_actor_kernel(%arg0: i32, %arg1: memref<48x128xf32, #tpu.memory_space<vmem>>, %arg2: memref<64x48xbf16, #tpu.memory_space<vmem>>, %arg3: memref<64x1xf32, #tpu.memory_space<vmem>>, %arg4: memref<32x1xf32, #tpu.memory_space<vmem>>, %arg5: memref<32x1xf32, #tpu.memory_space<vmem>>, %arg6: memref<32x32xbf16, #tpu.memory_space<vmem>>, %arg7: memref<32x1xf32, #tpu.memory_space<vmem>>, %arg8: memref<32x1xf32, #tpu.memory_space<vmem>>, %arg9: memref<32x1xf32, #tpu.memory_space<vmem>>, %arg10: memref<32x32xbf16, #tpu.memory_space<vmem>>, %arg11: memref<32x1xf32, #tpu.memory_space<vmem>>, %arg12: memref<32x32xbf16, #tpu.memory_space<vmem>>, %arg13: memref<32x1xf32, #tpu.memory_space<vmem>>, %arg14: memref<8x32xbf16, #tpu.memory_space<vmem>>, %arg15: memref<8x1xf32, #tpu.memory_space<vmem>>, %arg16: memref<16x128xf32, #tpu.memory_space<vmem>>) attributes {dimension_semantics = [#tpu.dimension_semantics<parallel>], iteration_bounds = array<i64: 1>, scalar_prefetch = 0 : i64, scratch_operands = 0 : i64, tpu.core_type = #tpu.core_type<tc>, window_params = [{transform_indices = @transform_0, window_bounds = array<i64: 48, 128>}, {pipeline_mode = #tpu.pipeline_mode<synchronous>, transform_indices = @transform_1, window_bounds = array<i64: 64, 48>}, {pipeline_mode = #tpu.pipeline_mode<synchronous>, transform_indices = @transform_2, window_bounds = array<i64: 64, 1>}, {pipeline_mode = #tpu.pipeline_mode<synchronous>, transform_indices = @transform_3, window_bounds = array<i64: 32, 1>}, {pipeline_mode = #tpu.pipeline_mode<synchronous>, transform_indices = @transform_4, window_bounds = array<i64: 32, 1>}, {pipeline_mode = #tpu.pipeline_mode<synchronous>, transform_indices = @transform_5, window_bounds = array<i64: 32, 32>}, {pipeline_mode = #tpu.pipeline_mode<synchronous>, transform_indices = @transform_6, window_bounds = array<i64: 32, 1>}, {pipeline_mode = #tpu.pipeline_mode<synchronous>, transform_indices = @transform_7, window_bounds = array<i64: 32, 1>}, {pipeline_mode = #tpu.pipeline_mode<synchronous>, transform_indices = @transform_8, window_bounds = array<i64: 32, 1>}, {pipeline_mode = #tpu.pipeline_mode<synchronous>, transform_indices = @transform_9, window_bounds = array<i64: 32, 32>}, {pipeline_mode = #tpu.pipeline_mode<synchronous>, transform_indices = @transform_10, window_bounds = array<i64: 32, 1>}, {pipeline_mode = #tpu.pipeline_mode<synchronous>, transform_indices = @transform_11, window_bounds = array<i64: 32, 32>}, {pipeline_mode = #tpu.pipeline_mode<synchronous>, transform_indices = @transform_12, window_bounds = array<i64: 32, 1>}, {pipeline_mode = #tpu.pipeline_mode<synchronous>, transform_indices = @transform_13, window_bounds = array<i64: 8, 32>}, {pipeline_mode = #tpu.pipeline_mode<synchronous>, transform_indices = @transform_14, window_bounds = array<i64: 8, 1>}, {transform_indices = @transform_15, window_bounds = array<i64: 16, 128>}]} {
    %c0 = arith.constant 0 : index
    %c0_0 = arith.constant 0 : index
    %0 = vector.load %arg1[%c0, %c0_0] : memref<48x128xf32, #tpu.memory_space<vmem>>, vector<48x128xf32>
    %1 = vector.extract_strided_slice %0 {offsets = [40, 0], sizes = [4, 128], strides = [1, 1]} : vector<48x128xf32> to vector<4x128xf32>
    %c0_1 = arith.constant 0 : index
    %c0_2 = arith.constant 0 : index
    %2 = vector.load %arg2[%c0_1, %c0_2] : memref<64x48xbf16, #tpu.memory_space<vmem>>, vector<64x48xbf16>
    %3 = arith.truncf %0 : vector<48x128xf32> to vector<48x128xbf16>
    %cst = arith.constant dense<0.000000e+00> : vector<64x128xf32>
    %4 = tpu.matmul %2, %3, %cst {dimension_numbers = #tpu.dot_dimension_numbers<[1], [0], [0], [1], [0, 0, 1, 1], [], []>} : vector<64x48xbf16>, vector<48x128xbf16>, vector<64x128xf32> -> vector<64x128xf32>
    %c0_3 = arith.constant 0 : index
    %c0_4 = arith.constant 0 : index
    %5 = vector.load %arg3[%c0_3, %c0_4] : memref<64x1xf32, #tpu.memory_space<vmem>>, vector<64x1xf32>
    %6 = vector.broadcast %5 : vector<64x1xf32> to vector<64x128xf32>
    %7 = arith.addf %4, %6 : vector<64x128xf32>
    %8 = vector.extract_strided_slice %7 {offsets = [0, 0], sizes = [32, 128], strides = [1, 1]} : vector<64x128xf32> to vector<32x128xf32>
    %cst_5 = arith.constant dense<0.000000e+00> : vector<128xf32>
    %9 = vector.multi_reduction <add>, %8, %cst_5 [0] : vector<32x128xf32> to vector<128xf32>
    %10 = vector.shape_cast %9 : vector<128xf32> to vector<1x128xf32>
    %cst_6 = arith.constant 3.200000e+01 : f32
    %11 = vector.broadcast %cst_6 : f32 to vector<1x128xf32>
    %12 = arith.divf %10, %11 : vector<1x128xf32>
    %13 = vector.broadcast %12 : vector<1x128xf32> to vector<32x128xf32>
    %14 = arith.subf %8, %13 : vector<32x128xf32>
    %15 = arith.mulf %14, %14 : vector<32x128xf32>
    %cst_7 = arith.constant dense<0.000000e+00> : vector<128xf32>
    %16 = vector.multi_reduction <add>, %15, %cst_7 [0] : vector<32x128xf32> to vector<128xf32>
    %17 = vector.shape_cast %16 : vector<128xf32> to vector<1x128xf32>
    %cst_8 = arith.constant 3.200000e+01 : f32
    %18 = vector.broadcast %cst_8 : f32 to vector<1x128xf32>
    %19 = arith.divf %17, %18 : vector<1x128xf32>
    %cst_9 = arith.constant 9.99999974E-6 : f32
    %20 = vector.broadcast %cst_9 : f32 to vector<1x128xf32>
    %21 = arith.addf %19, %20 : vector<1x128xf32>
    %22 = math.rsqrt %21 : vector<1x128xf32>
    %23 = vector.broadcast %22 : vector<1x128xf32> to vector<32x128xf32>
    %24 = arith.mulf %14, %23 : vector<32x128xf32>
    %c0_10 = arith.constant 0 : index
    %c0_11 = arith.constant 0 : index
    %25 = vector.load %arg4[%c0_10, %c0_11] : memref<32x1xf32, #tpu.memory_space<vmem>>, vector<32x1xf32>
    %26 = vector.broadcast %25 : vector<32x1xf32> to vector<32x128xf32>
    %27 = arith.mulf %24, %26 : vector<32x128xf32>
    %c0_12 = arith.constant 0 : index
    %c0_13 = arith.constant 0 : index
    %28 = vector.load %arg5[%c0_12, %c0_13] : memref<32x1xf32, #tpu.memory_space<vmem>>, vector<32x1xf32>
    %29 = vector.broadcast %28 : vector<32x1xf32> to vector<32x128xf32>
    %30 = arith.addf %27, %29 : vector<32x128xf32>
    %31 = math.tanh %30 : vector<32x128xf32>
    %32 = vector.extract_strided_slice %7 {offsets = [32, 0], sizes = [32, 128], strides = [1, 1]} : vector<64x128xf32> to vector<32x128xf32>
    %cst_14 = arith.constant 0.000000e+00 : f32
    %33 = vector.broadcast %cst_14 : f32 to vector<32x128xf32>
    %34 = arith.maximumf %32, %33 : vector<32x128xf32>
    %c0_15 = arith.constant 0 : index
    %c0_16 = arith.constant 0 : index
    %35 = vector.load %arg6[%c0_15, %c0_16] : memref<32x32xbf16, #tpu.memory_space<vmem>>, vector<32x32xbf16>
    %36 = arith.truncf %34 : vector<32x128xf32> to vector<32x128xbf16>
    %cst_17 = arith.constant dense<0.000000e+00> : vector<32x128xf32>
    %37 = tpu.matmul %35, %36, %cst_17 {dimension_numbers = #tpu.dot_dimension_numbers<[1], [0], [0], [1], [0, 0, 1, 1], [], []>} : vector<32x32xbf16>, vector<32x128xbf16>, vector<32x128xf32> -> vector<32x128xf32>
    %c0_18 = arith.constant 0 : index
    %c0_19 = arith.constant 0 : index
    %38 = vector.load %arg7[%c0_18, %c0_19] : memref<32x1xf32, #tpu.memory_space<vmem>>, vector<32x1xf32>
    %39 = vector.broadcast %38 : vector<32x1xf32> to vector<32x128xf32>
    %40 = arith.addf %37, %39 : vector<32x128xf32>
    %cst_20 = arith.constant dense<0.000000e+00> : vector<128xf32>
    %41 = vector.multi_reduction <add>, %40, %cst_20 [0] : vector<32x128xf32> to vector<128xf32>
    %42 = vector.shape_cast %41 : vector<128xf32> to vector<1x128xf32>
    %cst_21 = arith.constant 3.200000e+01 : f32
    %43 = vector.broadcast %cst_21 : f32 to vector<1x128xf32>
    %44 = arith.divf %42, %43 : vector<1x128xf32>
    %45 = vector.broadcast %44 : vector<1x128xf32> to vector<32x128xf32>
    %46 = arith.subf %40, %45 : vector<32x128xf32>
    %47 = arith.mulf %46, %46 : vector<32x128xf32>
    %cst_22 = arith.constant dense<0.000000e+00> : vector<128xf32>
    %48 = vector.multi_reduction <add>, %47, %cst_22 [0] : vector<32x128xf32> to vector<128xf32>
    %49 = vector.shape_cast %48 : vector<128xf32> to vector<1x128xf32>
    %cst_23 = arith.constant 3.200000e+01 : f32
    %50 = vector.broadcast %cst_23 : f32 to vector<1x128xf32>
    %51 = arith.divf %49, %50 : vector<1x128xf32>
    %cst_24 = arith.constant 9.99999974E-6 : f32
    %52 = vector.broadcast %cst_24 : f32 to vector<1x128xf32>
    %53 = arith.addf %51, %52 : vector<1x128xf32>
    %54 = math.rsqrt %53 : vector<1x128xf32>
    %55 = vector.broadcast %54 : vector<1x128xf32> to vector<32x128xf32>
    %56 = arith.mulf %46, %55 : vector<32x128xf32>
    %c0_25 = arith.constant 0 : index
    %c0_26 = arith.constant 0 : index
    %57 = vector.load %arg8[%c0_25, %c0_26] : memref<32x1xf32, #tpu.memory_space<vmem>>, vector<32x1xf32>
    %58 = vector.broadcast %57 : vector<32x1xf32> to vector<32x128xf32>
    %59 = arith.mulf %56, %58 : vector<32x128xf32>
    %c0_27 = arith.constant 0 : index
    %c0_28 = arith.constant 0 : index
    %60 = vector.load %arg9[%c0_27, %c0_28] : memref<32x1xf32, #tpu.memory_space<vmem>>, vector<32x1xf32>
    %61 = vector.broadcast %60 : vector<32x1xf32> to vector<32x128xf32>
    %62 = arith.addf %59, %61 : vector<32x128xf32>
    %63 = math.tanh %62 : vector<32x128xf32>
    %64 = arith.addf %31, %63 : vector<32x128xf32>
    %c0_29 = arith.constant 0 : index
    %c0_30 = arith.constant 0 : index
    %65 = vector.load %arg10[%c0_29, %c0_30] : memref<32x32xbf16, #tpu.memory_space<vmem>>, vector<32x32xbf16>
    %66 = arith.truncf %64 : vector<32x128xf32> to vector<32x128xbf16>
    %cst_31 = arith.constant dense<0.000000e+00> : vector<32x128xf32>
    %67 = tpu.matmul %65, %66, %cst_31 {dimension_numbers = #tpu.dot_dimension_numbers<[1], [0], [0], [1], [0, 0, 1, 1], [], []>} : vector<32x32xbf16>, vector<32x128xbf16>, vector<32x128xf32> -> vector<32x128xf32>
    %c0_32 = arith.constant 0 : index
    %c0_33 = arith.constant 0 : index
    %68 = vector.load %arg11[%c0_32, %c0_33] : memref<32x1xf32, #tpu.memory_space<vmem>>, vector<32x1xf32>
    %69 = vector.broadcast %68 : vector<32x1xf32> to vector<32x128xf32>
    %70 = arith.addf %67, %69 : vector<32x128xf32>
    %cst_34 = arith.constant 0.000000e+00 : f32
    %71 = vector.broadcast %cst_34 : f32 to vector<32x128xf32>
    %72 = arith.maximumf %70, %71 : vector<32x128xf32>
    %c0_35 = arith.constant 0 : index
    %c0_36 = arith.constant 0 : index
    %73 = vector.load %arg12[%c0_35, %c0_36] : memref<32x32xbf16, #tpu.memory_space<vmem>>, vector<32x32xbf16>
    %74 = arith.truncf %72 : vector<32x128xf32> to vector<32x128xbf16>
    %cst_37 = arith.constant dense<0.000000e+00> : vector<32x128xf32>
    %75 = tpu.matmul %73, %74, %cst_37 {dimension_numbers = #tpu.dot_dimension_numbers<[1], [0], [0], [1], [0, 0, 1, 1], [], []>} : vector<32x32xbf16>, vector<32x128xbf16>, vector<32x128xf32> -> vector<32x128xf32>
    %c0_38 = arith.constant 0 : index
    %c0_39 = arith.constant 0 : index
    %76 = vector.load %arg13[%c0_38, %c0_39] : memref<32x1xf32, #tpu.memory_space<vmem>>, vector<32x1xf32>
    %77 = vector.broadcast %76 : vector<32x1xf32> to vector<32x128xf32>
    %78 = arith.addf %75, %77 : vector<32x128xf32>
    %cst_40 = arith.constant 0.000000e+00 : f32
    %79 = vector.broadcast %cst_40 : f32 to vector<32x128xf32>
    %80 = arith.maximumf %78, %79 : vector<32x128xf32>
    %c0_41 = arith.constant 0 : index
    %c0_42 = arith.constant 0 : index
    %81 = vector.load %arg14[%c0_41, %c0_42] : memref<8x32xbf16, #tpu.memory_space<vmem>>, vector<8x32xbf16>
    %82 = arith.truncf %80 : vector<32x128xf32> to vector<32x128xbf16>
    %cst_43 = arith.constant dense<0.000000e+00> : vector<8x128xf32>
    %83 = tpu.matmul %81, %82, %cst_43 {dimension_numbers = #tpu.dot_dimension_numbers<[1], [0], [0], [1], [0, 0, 1, 1], [], []>} : vector<8x32xbf16>, vector<32x128xbf16>, vector<8x128xf32> -> vector<8x128xf32>
    %c0_44 = arith.constant 0 : index
    %c0_45 = arith.constant 0 : index
    %84 = vector.load %arg15[%c0_44, %c0_45] : memref<8x1xf32, #tpu.memory_space<vmem>>, vector<8x1xf32>
    %85 = vector.broadcast %84 : vector<8x1xf32> to vector<8x128xf32>
    %86 = arith.addf %83, %85 : vector<8x128xf32>
    %87 = vector.extract_strided_slice %86 {offsets = [0, 0], sizes = [4, 128], strides = [1, 1]} : vector<8x128xf32> to vector<4x128xf32>
    %88 = vector.extract_strided_slice %86 {offsets = [4, 0], sizes = [4, 128], strides = [1, 1]} : vector<8x128xf32> to vector<4x128xf32>
    %89 = math.tanh %88 : vector<4x128xf32>
    %cst_46 = arith.constant 1.000000e+00 : f32
    %90 = vector.broadcast %cst_46 : f32 to vector<4x128xf32>
    %91 = arith.addf %89, %90 : vector<4x128xf32>
    %cst_47 = arith.constant 6.000000e+00 : f32
    %92 = vector.broadcast %cst_47 : f32 to vector<4x128xf32>
    %93 = arith.mulf %92, %91 : vector<4x128xf32>
    %cst_48 = arith.constant -1.000000e+01 : f32
    %94 = vector.broadcast %cst_48 : f32 to vector<4x128xf32>
    %95 = arith.addf %94, %93 : vector<4x128xf32>
    %96 = math.exp %95 : vector<4x128xf32>
    %97 = arith.mulf %1, %96 : vector<4x128xf32>
    %98 = arith.addf %87, %97 : vector<4x128xf32>
    %cst_49 = arith.constant -5.000000e-01 : f32
    %99 = vector.broadcast %cst_49 : f32 to vector<4x128xf32>
    %100 = arith.mulf %99, %1 : vector<4x128xf32>
    %101 = arith.mulf %100, %1 : vector<4x128xf32>
    %102 = arith.subf %101, %95 : vector<4x128xf32>
    %cst_50 = arith.constant dense<0.000000e+00> : vector<128xf32>
    %103 = vector.multi_reduction <add>, %102, %cst_50 [0] : vector<4x128xf32> to vector<128xf32>
    %104 = vector.shape_cast %103 : vector<128xf32> to vector<1x128xf32>
    %cst_51 = arith.constant 3.67575407 : f32
    %105 = vector.broadcast %cst_51 : f32 to vector<1x128xf32>
    %106 = arith.subf %104, %105 : vector<1x128xf32>
    %107 = math.tanh %87 : vector<4x128xf32>
    %108 = math.tanh %98 : vector<4x128xf32>
    %109 = arith.mulf %108, %108 : vector<4x128xf32>
    %cst_52 = arith.constant 1.000000e+00 : f32
    %110 = vector.broadcast %cst_52 : f32 to vector<4x128xf32>
    %111 = arith.subf %110, %109 : vector<4x128xf32>
    %cst_53 = arith.constant 0.000000e+00 : f32
    %112 = vector.broadcast %cst_53 : f32 to vector<4x128xf32>
    %113 = arith.maximumf %111, %112 : vector<4x128xf32>
    %cst_54 = arith.constant 9.99999997E-7 : f32
    %114 = vector.broadcast %cst_54 : f32 to vector<4x128xf32>
    %115 = arith.addf %113, %114 : vector<4x128xf32>
    %116 = math.log %115 : vector<4x128xf32>
    %cst_55 = arith.constant dense<0.000000e+00> : vector<128xf32>
    %117 = vector.multi_reduction <add>, %116, %cst_55 [0] : vector<4x128xf32> to vector<128xf32>
    %118 = vector.shape_cast %117 : vector<128xf32> to vector<1x128xf32>
    %119 = arith.subf %106, %118 : vector<1x128xf32>
    %120 = vector.shape_cast %119 : vector<1x128xf32> to vector<1x128xf32>
    %121 = vector.broadcast %120 : vector<1x128xf32> to vector<4x128xf32>
    %122 = tpu.concatenate %107, %108, %95, %121 in 0 : vector<4x128xf32>, vector<4x128xf32>, vector<4x128xf32>, vector<4x128xf32> -> vector<16x128xf32>
    %c0_56 = arith.constant 0 : index
    %c0_57 = arith.constant 0 : index
    %123 = vector.load %arg16[%c0_56, %c0_57] : memref<16x128xf32, #tpu.memory_space<vmem>>, vector<16x128xf32>
    tpu.vector_store %arg16[%c0_56, %c0_57], %122 {strides = array<i32>} : memref<16x128xf32, #tpu.memory_space<vmem>>, vector<16x128xf32>,
    return
  }
  func.func @transform_0(%arg0: i32) -> (i32, i32) {
    %c0_i32 = arith.constant 0 : i32
    %c0_i32_0 = arith.constant 0 : i32
    return %c0_i32, %arg0 : i32, i32
  }
  func.func @transform_1(%arg0: i32) -> (i32, i32) {
    %c0_i32 = arith.constant 0 : i32
    %c0_i32_0 = arith.constant 0 : i32
    %c0_i32_1 = arith.constant 0 : i32
    return %c0_i32, %c0_i32_0 : i32, i32
  }
  func.func @transform_2(%arg0: i32) -> (i32, i32) {
    %c0_i32 = arith.constant 0 : i32
    %c0_i32_0 = arith.constant 0 : i32
    %c0_i32_1 = arith.constant 0 : i32
    return %c0_i32, %c0_i32_0 : i32, i32
  }
  func.func @transform_3(%arg0: i32) -> (i32, i32) {
    %c0_i32 = arith.constant 0 : i32
    %c0_i32_0 = arith.constant 0 : i32
    %c0_i32_1 = arith.constant 0 : i32
    return %c0_i32, %c0_i32_0 : i32, i32
  }
  func.func @transform_4(%arg0: i32) -> (i32, i32) {
    %c0_i32 = arith.constant 0 : i32
    %c0_i32_0 = arith.constant 0 : i32
    %c0_i32_1 = arith.constant 0 : i32
    return %c0_i32, %c0_i32_0 : i32, i32
  }
  func.func @transform_5(%arg0: i32) -> (i32, i32) {
    %c0_i32 = arith.constant 0 : i32
    %c0_i32_0 = arith.constant 0 : i32
    %c0_i32_1 = arith.constant 0 : i32
    return %c0_i32, %c0_i32_0 : i32, i32
  }
  func.func @transform_6(%arg0: i32) -> (i32, i32) {
    %c0_i32 = arith.constant 0 : i32
    %c0_i32_0 = arith.constant 0 : i32
    %c0_i32_1 = arith.constant 0 : i32
    return %c0_i32, %c0_i32_0 : i32, i32
  }
  func.func @transform_7(%arg0: i32) -> (i32, i32) {
    %c0_i32 = arith.constant 0 : i32
    %c0_i32_0 = arith.constant 0 : i32
    %c0_i32_1 = arith.constant 0 : i32
    return %c0_i32, %c0_i32_0 : i32, i32
  }
  func.func @transform_8(%arg0: i32) -> (i32, i32) {
    %c0_i32 = arith.constant 0 : i32
    %c0_i32_0 = arith.constant 0 : i32
    %c0_i32_1 = arith.constant 0 : i32
    return %c0_i32, %c0_i32_0 : i32, i32
  }
  func.func @transform_9(%arg0: i32) -> (i32, i32) {
    %c0_i32 = arith.constant 0 : i32
    %c0_i32_0 = arith.constant 0 : i32
    %c0_i32_1 = arith.constant 0 : i32
    return %c0_i32, %c0_i32_0 : i32, i32
  }
  func.func @transform_10(%arg0: i32) -> (i32, i32) {
    %c0_i32 = arith.constant 0 : i32
    %c0_i32_0 = arith.constant 0 : i32
    %c0_i32_1 = arith.constant 0 : i32
    return %c0_i32, %c0_i32_0 : i32, i32
  }
  func.func @transform_11(%arg0: i32) -> (i32, i32) {
    %c0_i32 = arith.constant 0 : i32
    %c0_i32_0 = arith.constant 0 : i32
    %c0_i32_1 = arith.constant 0 : i32
    return %c0_i32, %c0_i32_0 : i32, i32
  }
  func.func @transform_12(%arg0: i32) -> (i32, i32) {
    %c0_i32 = arith.constant 0 : i32
    %c0_i32_0 = arith.constant 0 : i32
    %c0_i32_1 = arith.constant 0 : i32
    return %c0_i32, %c0_i32_0 : i32, i32
  }
  func.func @transform_13(%arg0: i32) -> (i32, i32) {
    %c0_i32 = arith.constant 0 : i32
    %c0_i32_0 = arith.constant 0 : i32
    %c0_i32_1 = arith.constant 0 : i32
    return %c0_i32, %c0_i32_0 : i32, i32
  }
  func.func @transform_14(%arg0: i32) -> (i32, i32) {
    %c0_i32 = arith.constant 0 : i32
    %c0_i32_0 = arith.constant 0 : i32
    %c0_i32_1 = arith.constant 0 : i32
    return %c0_i32, %c0_i32_0 : i32, i32
  }
  func.func @transform_15(%arg0: i32) -> (i32, i32) {
    %c0_i32 = arith.constant 0 : i32
    %c0_i32_0 = arith.constant 0 : i32
    return %c0_i32, %arg0 : i32, i32
  }
}

</mosaic_0001>

<llo_original>
// kernel: tpu_custom_call.1
$region0: #{tpu_custom_call.1}
  #allocation0 [shape = 'u32[]', space=smem, size = 0x4, offset = 0x4, fixed_abs, tag = 'smem constant byte address 0x4 - core index']
  #allocation1 [shape = 'u32[144,128]{1,0:T(1,128)}', space=vmem, size = 0x12000, scoped, tag = 'internal scratch']
  %s0 = inlined_call_operand.vmem [shape: f32[48,128], index: 0, kind: input, shape index: {}]
  %s1 = inlined_call_operand.vmem [shape: bf16[64,48], index: 1, kind: input, shape index: {}]
  %s2 = inlined_call_operand.vmem [shape: f32[64,1], index: 2, kind: input, shape index: {}]
  %s3 = inlined_call_operand.vmem [shape: f32[32,1], index: 3, kind: input, shape index: {}]
  %s4 = inlined_call_operand.vmem [shape: f32[32,1], index: 4, kind: input, shape index: {}]
  %s5 = inlined_call_operand.vmem [shape: bf16[32,32], index: 5, kind: input, shape index: {}]
  %s6 = inlined_call_operand.vmem [shape: f32[32,1], index: 6, kind: input, shape index: {}]
  %s7 = inlined_call_operand.vmem [shape: f32[32,1], index: 7, kind: input, shape index: {}]
  %s8 = inlined_call_operand.vmem [shape: f32[32,1], index: 8, kind: input, shape index: {}]
  %s9 = inlined_call_operand.vmem [shape: bf16[32,32], index: 9, kind: input, shape index: {}]
  %s10 = inlined_call_operand.vmem [shape: f32[32,1], index: 10, kind: input, shape index: {}]
  %s11 = inlined_call_operand.vmem [shape: bf16[32,32], index: 11, kind: input, shape index: {}]
  %s12 = inlined_call_operand.vmem [shape: f32[32,1], index: 12, kind: input, shape index: {}]
  %s13 = inlined_call_operand.vmem [shape: bf16[8,32], index: 13, kind: input, shape index: {}]
  %s14 = inlined_call_operand.vmem [shape: f32[8,1], index: 14, kind: input, shape index: {}]
  %s15 = inlined_call_operand.hbm [shape: f32[16,128], index: 15, kind: output, shape index: {}]
  %s16 = sld [smem:[#allocation0]]
  $region70: #{tpu_custom_call.1} parent=0
    _
  %s18 = ssub.s32 1, %s16
  %s19 = scalar_select 0, %s18, %s16
  $region1: #{tpu_custom_call.1} parent=0
    #allocation2 [shape = 'u8[8192]{0}', space=vmem, size = 0x2000, scoped, tag = 'output window, operand 0, single buffered']
    #allocation3 [shape = 's32[1]{0}', space=sflag, size = 0x4, scoped, tag = 'scoped memory for tpu_custom_call.1']
    %20 = vsyncpa [#allocation3], 0
    // Predicated region
    $region2: #{tpu_custom_call.1} parent=1 // pred_check
      _
    $region3: #{tpu_custom_call.1} parent=1 // pred_check_branch
      %22 = sbr.rel (0) target = $region5
    $region4: #{tpu_custom_call.1} parent=1 // pred_region
      _
    $region5: #{tpu_custom_call.1} parent=1 // pred_fallthru
      _
    // Predicated region
    $region6: #{tpu_custom_call.1} parent=1 // pred_check
      _
    $region7: #{tpu_custom_call.1} parent=1 // pred_check_branch
      %24 = sbr.rel (0) target = $region9
    $region8: #{tpu_custom_call.1} parent=1 // pred_region
      _
    $region9: #{tpu_custom_call.1} parent=1 // pred_fallthru
      _
    // Predicated region
    $region10: #{tpu_custom_call.1} parent=1 // pred_check
      _
    $region11: #{tpu_custom_call.1} parent=1 // pred_check_branch
      %26 = sbr.rel (0) target = $region13
    $region12: #{tpu_custom_call.1} parent=1 // pred_region
      _
    $region13: #{tpu_custom_call.1} parent=1 // pred_fallthru
      _
    // Predicated region
    $region14: #{tpu_custom_call.1} parent=1 // pred_check
      _
    $region15: #{tpu_custom_call.1} parent=1 // pred_check_branch
      %28 = sbr.rel (0) target = $region17
    $region16: #{tpu_custom_call.1} parent=1 // pred_region
      _
    $region17: #{tpu_custom_call.1} parent=1 // pred_fallthru
      _
    // Predicated region
    $region18: #{tpu_custom_call.1} parent=1 // pred_check
      _
    $region19: #{tpu_custom_call.1} parent=1 // pred_check_branch
      %30 = sbr.rel (0) target = $region21
    $region20: #{tpu_custom_call.1} parent=1 // pred_region
      _
    $region21: #{tpu_custom_call.1} parent=1 // pred_fallthru
      _
    // Predicated region
    $region22: #{tpu_custom_call.1} parent=1 // pred_check
      _
    $region23: #{tpu_custom_call.1} parent=1 // pred_check_branch
      %32 = sbr.rel (0) target = $region25
    $region24: #{tpu_custom_call.1} parent=1 // pred_region
      _
    $region25: #{tpu_custom_call.1} parent=1 // pred_fallthru
      _
    // Predicated region
    $region26: #{tpu_custom_call.1} parent=1 // pred_check
      _
    $region27: #{tpu_custom_call.1} parent=1 // pred_check_branch
      %34 = sbr.rel (0) target = $region29
    $region28: #{tpu_custom_call.1} parent=1 // pred_region
      _
    $region29: #{tpu_custom_call.1} parent=1 // pred_fallthru
      _
    // Predicated region
    $region30: #{tpu_custom_call.1} parent=1 // pred_check
      _
    $region31: #{tpu_custom_call.1} parent=1 // pred_check_branch
      %36 = sbr.rel (0) target = $region33
    $region32: #{tpu_custom_call.1} parent=1 // pred_region
      _
    $region33: #{tpu_custom_call.1} parent=1 // pred_fallthru
      _
    // Predicated region
    $region34: #{tpu_custom_call.1} parent=1 // pred_check
      _
    $region35: #{tpu_custom_call.1} parent=1 // pred_check_branch
      %38 = sbr.rel (0) target = $region37
    $region36: #{tpu_custom_call.1} parent=1 // pred_region
      _
    $region37: #{tpu_custom_call.1} parent=1 // pred_fallthru
      _
    // Predicated region
    $region38: #{tpu_custom_call.1} parent=1 // pred_check
      _
    $region39: #{tpu_custom_call.1} parent=1 // pred_check_branch
      %40 = sbr.rel (0) target = $region41
    $region40: #{tpu_custom_call.1} parent=1 // pred_region
      _
    $region41: #{tpu_custom_call.1} parent=1 // pred_fallthru
      _
    // Predicated region
    $region42: #{tpu_custom_call.1} parent=1 // pred_check
      _
    $region43: #{tpu_custom_call.1} parent=1 // pred_check_branch
      %42 = sbr.rel (0) target = $region45
    $region44: #{tpu_custom_call.1} parent=1 // pred_region
      _
    $region45: #{tpu_custom_call.1} parent=1 // pred_fallthru
      _
    // Predicated region
    $region46: #{tpu_custom_call.1} parent=1 // pred_check
      _
    $region47: #{tpu_custom_call.1} parent=1 // pred_check_branch
      %44 = sbr.rel (0) target = $region49
    $region48: #{tpu_custom_call.1} parent=1 // pred_region
      _
    $region49: #{tpu_custom_call.1} parent=1 // pred_fallthru
      _
    // Predicated region
    $region50: #{tpu_custom_call.1} parent=1 // pred_check
      _
    $region51: #{tpu_custom_call.1} parent=1 // pred_check_branch
      %46 = sbr.rel (0) target = $region53
    $region52: #{tpu_custom_call.1} parent=1 // pred_region
      _
    $region53: #{tpu_custom_call.1} parent=1 // pred_fallthru
      _
    // Predicated region
    $region54: #{tpu_custom_call.1} parent=1 // pred_check
      _
    $region55: #{tpu_custom_call.1} parent=1 // pred_check_branch
      %48 = sbr.rel (0) target = $region57
    $region56: #{tpu_custom_call.1} parent=1 // pred_region
      _
    $region57: #{tpu_custom_call.1} parent=1 // pred_fallthru
      _
    // Predicated region
    $region58: #{tpu_custom_call.1} parent=1 // pred_check
      _
    $region59: #{tpu_custom_call.1} parent=1 // pred_check_branch
      %50 = sbr.rel (0) target = $region61
    $region60: #{tpu_custom_call.1} parent=1 // pred_region
      _
    $region61: #{tpu_custom_call.1} parent=1 // pred_fallthru
      _
    %v52 = vld [vmem:[%s0] sm:$0xff]
    %v53 = vld [vmem:[%s0 + $0x8] sm:$0xff]
    %v54 = vld [vmem:[%s0 + $0x10] sm:$0xff]
    %v55 = vld [vmem:[%s0 + $0x18] sm:$0xff]
    %v56 = vld [vmem:[%s0 + $0x20] sm:$0xff]
    %v57 = vld [vmem:[%s0 + $0x28] sm:$0xff]
    %v58 = vld [vmem:[%s1] sm:$0xf]
    %v59 = vld [vmem:[%s1 + $0x4] sm:$0xf]
    %v60 = vld [vmem:[%s1 + $0x8] sm:$0xf]
    %v61 = vld [vmem:[%s1 + $0xc] sm:$0xf]
    %v62 = vld [vmem:[%s1 + $0x10] sm:$0xf]
    %v63 = vld [vmem:[%s1 + $0x14] sm:$0xf]
    %v64 = vld [vmem:[%s1 + $0x18] sm:$0xf]
    %v65 = vld [vmem:[%s1 + $0x1c] sm:$0xf]
    %v66 = vpack.c.bf16 %v53, %v52
    %v67 = vpack.c.bf16 %v55, %v54
    %v68 = vpack.c.bf16 %v57, %v56
    %v69 = vld [vmem:[%s2] sm:$0xff]
    %v70 = vld [vmem:[%s2 + $0x8] sm:$0xff]
    %v71 = vld [vmem:[%s2 + $0x10] sm:$0xff]
    %v72 = vld [vmem:[%s2 + $0x18] sm:$0xff]
    %v73 = vld [vmem:[%s2 + $0x20] sm:$0xff]
    %v74 = vld [vmem:[%s2 + $0x28] sm:$0xff]
    %v75 = vld [vmem:[%s2 + $0x30] sm:$0xff]
    %v76 = vld [vmem:[%s2 + $0x38] sm:$0xff]
    %78 = vset.pattern.permute.xlu0 0
    %79 = vperm.xlu0 %78, %v69
    %v80 = vpop.permute.xlu0 %79
    %83 = vset.pattern.permute.xlu0 0
    %84 = vperm.xlu0 %83, %v70
    %v85 = vpop.permute.xlu0 %84
    %88 = vset.pattern.permute.xlu0 0
    %89 = vperm.xlu0 %88, %v71
    %v90 = vpop.permute.xlu0 %89
    %93 = vset.pattern.permute.xlu0 0
    %94 = vperm.xlu0 %93, %v72
    %v95 = vpop.permute.xlu0 %94
    %98 = vset.pattern.permute.xlu0 0
    %99 = vperm.xlu0 %98, %v73
    %v100 = vpop.permute.xlu0 %99
    %103 = vset.pattern.permute.xlu0 0
    %104 = vperm.xlu0 %103, %v74
    %v105 = vpop.permute.xlu0 %104
    %108 = vset.pattern.permute.xlu0 0
    %109 = vperm.xlu0 %108, %v75
    %v110 = vpop.permute.xlu0 %109
    %113 = vset.pattern.permute.xlu0 0
    %114 = vperm.xlu0 %113, %v76
    %v115 = vpop.permute.xlu0 %114
    %v125 = vunpack.c.l.b16 %v58
    %v126 = vunpack.c.l.b16 %v59
    %v127 = vunpack.c.l.b16 %v60
    %v128 = vunpack.c.l.b16 %v61
    %v129 = vunpack.c.l.b16 %v62
    %v130 = vunpack.c.l.b16 %v63
    %v131 = vunpack.c.l.b16 %v64
    %v132 = vunpack.c.l.b16 %v65
    %v133 = vpack.c.b16 %v126, %v125
    %v134 = vpack.c.b16 %v128, %v127
    %v135 = vpack.c.b16 %v130, %v129
    %v136 = vpack.c.b16 %v132, %v131
    %vm137 = vcmask 392192
    %v139 = vsel %vm137, %v133, 0
    %v142 = vsel %vm137, %v134, 0
    %v145 = vsel %vm137, %v135, 0
    %v148 = vsel %vm137, %v136, 0
    %150 = vmatprep.subr.bf16.mxu0 0
    %151 = vmatpush1.bf16.msra.mxu0 %v66
    %152 = vmatprep.subr.bf16.mxu0 0
    %153 = vmatpush1.bf16.msra.mxu0 %v67
    %154 = vmatprep.subr.bf16.mxu0 0
    %155 = vmatpush1.bf16.msra.mxu0 %v68
    %156 = vmatprep.subr.bf16.mxu0 0
    %157 = vmatpush1.bf16.msra.mxu0 0
    %158 = vmatprep.subr.bf16.mxu0 0
    %159 = vmatpush1.bf16.msra.mxu0 0
    %160 = vmatprep.subr.bf16.mxu0 0
    %161 = vmatpush1.bf16.msra.mxu0 0
    %162 = vmatprep.subr.bf16.mxu0 0
    %163 = vmatpush1.bf16.msra.mxu0 0
    %164 = vmatprep.subr.bf16.mxu0 0
    %165 = vmatpush1.bf16.msra.mxu0 0
    %166 = vmatprep.subr.bf16.mxu0 0
    %167 = vmatpush1.bf16.msra.mxu0 0
    %168 = vmatprep.subr.bf16.mxu0 0
    %169 = vmatpush1.bf16.msra.mxu0 0
    %170 = vmatprep.subr.bf16.mxu0 0
    %171 = vmatpush1.bf16.msra.mxu0 0
    %172 = vmatprep.subr.bf16.mxu0 0
    %173 = vmatpush1.bf16.msra.mxu0 0
    %174 = vmatprep.subr.bf16.mxu0 0
    %175 = vmatpush1.bf16.msra.mxu0 0
    %176 = vmatprep.subr.bf16.mxu0 0
    %177 = vmatpush1.bf16.msra.mxu0 0
    %178 = vmatprep.subr.bf16.mxu0 0
    %179 = vmatpush1.bf16.msra.mxu0 0
    %180 = vmatprep.subr.bf16.mxu0 0
    %181 = vmatpush1.bf16.msra.mxu0 0
    %182 = vmatprep.mubr.bf16.mxu0 0
    %183 = vmatmul.mubr.bf16.gmra.mrb[0].mxu0 %v139
    %v184 = vpop.f32.mrb[0].mxu0
    %v185 = vadd.f32 %v80, %v184
    %v186 = vpop.f32.mrb[0].mxu0
    %v187 = vpop.f32.mrb[0].mxu0
    %v188 = vadd.f32 %v85, %v187
    %v189 = vpop.f32.mrb[0].mxu0
    %190 = vmatprep.mubr.bf16.mxu0 0
    %191 = vmatmul.mubr.bf16.gmra.mrb[0].mxu0 %v142
    %v192 = vpop.f32.mrb[0].mxu0
    %v193 = vadd.f32 %v90, %v192
    %v194 = vpop.f32.mrb[0].mxu0
    %v195 = vpop.f32.mrb[0].mxu0
    %v196 = vadd.f32 %v95, %v195
    %v197 = vpop.f32.mrb[0].mxu0
    %198 = vmatprep.mubr.bf16.mxu0 0
    %199 = vmatmul.mubr.bf16.gmra.mrb[0].mxu0 %v145
    %v200 = vpop.f32.mrb[0].mxu0
    %v201 = vadd.f32 %v100, %v200
    %v202 = vpop.f32.mrb[0].mxu0
    %v203 = vpop.f32.mrb[0].mxu0
    %v204 = vadd.f32 %v105, %v203
    %v205 = vpop.f32.mrb[0].mxu0
    %206 = vmatprep.mubr.bf16.mxu0 0
    %207 = vmatmul.mubr.bf16.gmra.mrb[0].mxu0 %v148
    %v208 = vpop.f32.mrb[0].mxu0
    %v209 = vadd.f32 %v110, %v208
    %v210 = vpop.f32.mrb[0].mxu0
    %v211 = vpop.f32.mrb[0].mxu0
    %v212 = vadd.f32 %v115, %v211
    %v213 = vpop.f32.mrb[0].mxu0
    %214 = vdwg.mxu0
    %v215 = vadd.f32 %v185, %v188
    %v216 = vadd.f32 %v215, %v193
    %v217 = vadd.f32 %v216, %v196
    %v218 = vrot.slane %v217, 4
    %v219 = vadd.f32 %v217, %v218
    %v220 = vrot.slane %v219, 2
    %v221 = vadd.f32 %v219, %v220
    %v222 = vrot.slane %v221, 1
    %v223 = vadd.f32 %v221, %v222
    %v224 = vrcp.pop 32.0
    %v225 = vmul.f32 %v223, %v224
    %v226 = vsub.f32 %v185, %v225
    %v227 = vsub.f32 %v188, %v225
    %v228 = vsub.f32 %v193, %v225
    %v229 = vsub.f32 %v196, %v225
    %v230 = vmul.f32 %v226, %v226
    %v231 = vmul.f32 %v227, %v227
    %v232 = vmul.f32 %v228, %v228
    %v233 = vmul.f32 %v229, %v229
    %v234 = vadd.f32 %v230, %v231
    %v235 = vadd.f32 %v234, %v232
    %v236 = vadd.f32 %v235, %v233
    %v237 = vrot.slane %v236, 4
    %v238 = vadd.f32 %v236, %v237
    %v239 = vrot.slane %v238, 2
    %v240 = vadd.f32 %v238, %v239
    %v241 = vrot.slane %v240, 1
    %v242 = vadd.f32 %v240, %v241
    %v243 = vmul.f32 %v242, %v224
    %v244 = vadd.f32 %v243, 1e-05
    %v245 = vrsqrt.pop %v244
    %v246 = vmul.f32 %v226, %v245
    %v247 = vmul.f32 %v227, %v245
    %v248 = vmul.f32 %v228, %v245
    %v249 = vmul.f32 %v229, %v245
    %v250 = vld [vmem:[%s3] sm:$0xff]
    %v251 = vld [vmem:[%s3 + $0x8] sm:$0xff]
    %v252 = vld [vmem:[%s3 + $0x10] sm:$0xff]
    %v253 = vld [vmem:[%s3 + $0x18] sm:$0xff]
    %255 = vset.pattern.permute.xlu0 0
    %256 = vperm.xlu0 %255, %v250
    %v257 = vpop.permute.xlu0 %256
    %260 = vset.pattern.permute.xlu0 0
    %261 = vperm.xlu0 %260, %v251
    %v262 = vpop.permute.xlu0 %261
    %265 = vset.pattern.permute.xlu0 0
    %266 = vperm.xlu0 %265, %v252
    %v267 = vpop.permute.xlu0 %266
    %270 = vset.pattern.permute.xlu0 0
    %271 = vperm.xlu0 %270, %v253
    %v272 = vpop.permute.xlu0 %271
    %v274 = vmul.f32 %v246, %v257
    %v275 = vmul.f32 %v247, %v262
    %v276 = vmul.f32 %v248, %v267
    %v277 = vmul.f32 %v249, %v272
    %v278 = vld [vmem:[%s4] sm:$0xff]
    %v279 = vld [vmem:[%s4 + $0x8] sm:$0xff]
    %v280 = vld [vmem:[%s4 + $0x10] sm:$0xff]
    %v281 = vld [vmem:[%s4 + $0x18] sm:$0xff]
    %283 = vset.pattern.permute.xlu0 0
    %284 = vperm.xlu0 %283, %v278
    %v285 = vpop.permute.xlu0 %284
    %288 = vset.pattern.permute.xlu0 0
    %289 = vperm.xlu0 %288, %v279
    %v290 = vpop.permute.xlu0 %289
    %293 = vset.pattern.permute.xlu0 0
    %294 = vperm.xlu0 %293, %v280
    %v295 = vpop.permute.xlu0 %294
    %298 = vset.pattern.permute.xlu0 0
    %299 = vperm.xlu0 %298, %v281
    %v300 = vpop.permute.xlu0 %299
    %v302 = vadd.f32 %v274, %v285
    %v303 = vadd.f32 %v275, %v290
    %v304 = vadd.f32 %v276, %v295
    %v305 = vadd.f32 %v277, %v300
    %v306 = vtanh.pop %v302
    %v307 = vtanh.pop %v303
    %v308 = vtanh.pop %v304
    %v309 = vtanh.pop %v305
    %v310 = vmax.f32 %v201, 0.0
    %v311 = vmax.f32 %v204, 0.0
    %v312 = vmax.f32 %v209, 0.0
    %v313 = vmax.f32 %v212, 0.0
    %v314 = vld [vmem:[%s5] sm:$0xf]
    %v315 = vld [vmem:[%s5 + $0x4] sm:$0xf]
    %v316 = vld [vmem:[%s5 + $0x8] sm:$0xf]
    %v317 = vld [vmem:[%s5 + $0xc] sm:$0xf]
    %v318 = vpack.c.bf16 %v311, %v310
    %v319 = vpack.c.bf16 %v313, %v312
    %v320 = vld [vmem:[%s6] sm:$0xff]
    %v321 = vld [vmem:[%s6 + $0x8] sm:$0xff]
    %v322 = vld [vmem:[%s6 + $0x10] sm:$0xff]
    %v323 = vld [vmem:[%s6 + $0x18] sm:$0xff]
    %325 = vset.pattern.permute.xlu0 0
    %326 = vperm.xlu0 %325, %v320
    %v327 = vpop.permute.xlu0 %326
    %330 = vset.pattern.permute.xlu0 0
    %331 = vperm.xlu0 %330, %v321
    %v332 = vpop.permute.xlu0 %331
    %335 = vset.pattern.permute.xlu0 0
    %336 = vperm.xlu0 %335, %v322
    %v337 = vpop.permute.xlu0 %336
    %340 = vset.pattern.permute.xlu0 0
    %341 = vperm.xlu0 %340, %v323
    %v342 = vpop.permute.xlu0 %341
    %v348 = vunpack.c.l.b16 %v314
    %v349 = vunpack.c.l.b16 %v315
    %v350 = vunpack.c.l.b16 %v316
    %v351 = vunpack.c.l.b16 %v317
    %v352 = vpack.c.b16 %v349, %v348
    %v353 = vpack.c.b16 %v351, %v350
    %vm354 = vcmask 261120
    %v356 = vsel %vm354, %v352, 0
    %v359 = vsel %vm354, %v353, 0
    %361 = vmatprep.subr.bf16.mxu0 0
    %362 = vmatpush1.bf16.msra.mxu0 %v318
    %363 = vmatprep.subr.bf16.mxu0 0
    %364 = vmatpush1.bf16.msra.mxu0 %v319
    %365 = vmatprep.subr.bf16.mxu0 0
    %366 = vmatpush1.bf16.msra.mxu0 0
    %367 = vmatprep.subr.bf16.mxu0 0
    %368 = vmatpush1.bf16.msra.mxu0 0
    %369 = vmatprep.subr.bf16.mxu0 0
    %370 = vmatpush1.bf16.msra.mxu0 0
    %371 = vmatprep.subr.bf16.mxu0 0
    %372 = vmatpush1.bf16.msra.mxu0 0
    %373 = vmatprep.subr.bf16.mxu0 0
    %374 = vmatpush1.bf16.msra.mxu0 0
    %375 = vmatprep.subr.bf16.mxu0 0
    %376 = vmatpush1.bf16.msra.mxu0 0
    %377 = vmatprep.subr.bf16.mxu0 0
    %378 = vmatpush1.bf16.msra.mxu0 0
    %379 = vmatprep.subr.bf16.mxu0 0
    %380 = vmatpush1.bf16.msra.mxu0 0
    %381 = vmatprep.subr.bf16.mxu0 0
    %382 = vmatpush1.bf16.msra.mxu0 0
    %383 = vmatprep.subr.bf16.mxu0 0
    %384 = vmatpush1.bf16.msra.mxu0 0
    %385 = vmatprep.subr.bf16.mxu0 0
    %386 = vmatpush1.bf16.msra.mxu0 0
    %387 = vmatprep.subr.bf16.mxu0 0
    %388 = vmatpush1.bf16.msra.mxu0 0
    %389 = vmatprep.subr.bf16.mxu0 0
    %390 = vmatpush1.bf16.msra.mxu0 0
    %391 = vmatprep.subr.bf16.mxu0 0
    %392 = vmatpush1.bf16.msra.mxu0 0
    %393 = vmatprep.mubr.bf16.mxu0 0
    %394 = vmatmul.mubr.bf16.gmra.mrb[0].mxu0 %v356
    %v395 = vpop.f32.mrb[0].mxu0
    %v396 = vadd.f32 %v327, %v395
    %v397 = vpop.f32.mrb[0].mxu0
    %v398 = vpop.f32.mrb[0].mxu0
    %v399 = vadd.f32 %v332, %v398
    %v400 = vpop.f32.mrb[0].mxu0
    %401 = vmatprep.mubr.bf16.mxu0 0
    %402 = vmatmul.mubr.bf16.gmra.mrb[0].mxu0 %v359
    %v403 = vpop.f32.mrb[0].mxu0
    %v404 = vadd.f32 %v337, %v403
    %v405 = vpop.f32.mrb[0].mxu0
    %v406 = vpop.f32.mrb[0].mxu0
    %v407 = vadd.f32 %v342, %v406
    %v408 = vpop.f32.mrb[0].mxu0
    %409 = vdwg.mxu0
    %v410 = vadd.f32 %v396, %v399
    %v411 = vadd.f32 %v410, %v404
    %v412 = vadd.f32 %v411, %v407
    %v413 = vrot.slane %v412, 4
    %v414 = vadd.f32 %v412, %v413
    %v415 = vrot.slane %v414, 2
    %v416 = vadd.f32 %v414, %v415
    %v417 = vrot.slane %v416, 1
    %v418 = vadd.f32 %v416, %v417
    %v419 = vmul.f32 %v418, %v224
    %v420 = vsub.f32 %v396, %v419
    %v421 = vsub.f32 %v399, %v419
    %v422 = vsub.f32 %v404, %v419
    %v423 = vsub.f32 %v407, %v419
    %v424 = vmul.f32 %v420, %v420
    %v425 = vmul.f32 %v421, %v421
    %v426 = vmul.f32 %v422, %v422
    %v427 = vmul.f32 %v423, %v423
    %v428 = vadd.f32 %v424, %v425
    %v429 = vadd.f32 %v428, %v426
    %v430 = vadd.f32 %v429, %v427
    %v431 = vrot.slane %v430, 4
    %v432 = vadd.f32 %v430, %v431
    %v433 = vrot.slane %v432, 2
    %v434 = vadd.f32 %v432, %v433
    %v435 = vrot.slane %v434, 1
    %v436 = vadd.f32 %v434, %v435
    %v437 = vmul.f32 %v436, %v224
    %v438 = vadd.f32 %v437, 1e-05
    %v439 = vrsqrt.pop %v438
    %v440 = vmul.f32 %v420, %v439
    %v441 = vmul.f32 %v421, %v439
    %v442 = vmul.f32 %v422, %v439
    %v443 = vmul.f32 %v423, %v439
    %v444 = vld [vmem:[%s7] sm:$0xff]
    %v445 = vld [vmem:[%s7 + $0x8] sm:$0xff]
    %v446 = vld [vmem:[%s7 + $0x10] sm:$0xff]
    %v447 = vld [vmem:[%s7 + $0x18] sm:$0xff]
    %449 = vset.pattern.permute.xlu0 0
    %450 = vperm.xlu0 %449, %v444
    %v451 = vpop.permute.xlu0 %450
    %454 = vset.pattern.permute.xlu0 0
    %455 = vperm.xlu0 %454, %v445
    %v456 = vpop.permute.xlu0 %455
    %459 = vset.pattern.permute.xlu0 0
    %460 = vperm.xlu0 %459, %v446
    %v461 = vpop.permute.xlu0 %460
    %464 = vset.pattern.permute.xlu0 0
    %465 = vperm.xlu0 %464, %v447
    %v466 = vpop.permute.xlu0 %465
    %v468 = vmul.f32 %v440, %v451
    %v469 = vmul.f32 %v441, %v456
    %v470 = vmul.f32 %v442, %v461
    %v471 = vmul.f32 %v443, %v466
    %v472 = vld [vmem:[%s8] sm:$0xff]
    %v473 = vld [vmem:[%s8 + $0x8] sm:$0xff]
    %v474 = vld [vmem:[%s8 + $0x10] sm:$0xff]
    %v475 = vld [vmem:[%s8 + $0x18] sm:$0xff]
    %477 = vset.pattern.permute.xlu0 0
    %478 = vperm.xlu0 %477, %v472
    %v479 = vpop.permute.xlu0 %478
    %482 = vset.pattern.permute.xlu0 0
    %483 = vperm.xlu0 %482, %v473
    %v484 = vpop.permute.xlu0 %483
    %487 = vset.pattern.permute.xlu0 0
    %488 = vperm.xlu0 %487, %v474
    %v489 = vpop.permute.xlu0 %488
    %492 = vset.pattern.permute.xlu0 0
    %493 = vperm.xlu0 %492, %v475
    %v494 = vpop.permute.xlu0 %493
    %v496 = vadd.f32 %v468, %v479
    %v497 = vadd.f32 %v469, %v484
    %v498 = vadd.f32 %v470, %v489
    %v499 = vadd.f32 %v471, %v494
    %v500 = vtanh.pop %v496
    %v501 = vtanh.pop %v497
    %v502 = vtanh.pop %v498
    %v503 = vtanh.pop %v499
    %v504 = vadd.f32 %v306, %v500
    %v505 = vadd.f32 %v307, %v501
    %v506 = vadd.f32 %v308, %v502
    %v507 = vadd.f32 %v309, %v503
    %v508 = vld [vmem:[%s9] sm:$0xf]
    %v509 = vld [vmem:[%s9 + $0x4] sm:$0xf]
    %v510 = vld [vmem:[%s9 + $0x8] sm:$0xf]
    %v511 = vld [vmem:[%s9 + $0xc] sm:$0xf]
    %v512 = vpack.c.bf16 %v505, %v504
    %v513 = vpack.c.bf16 %v507, %v506
    %v514 = vld [vmem:[%s10] sm:$0xff]
    %v515 = vld [vmem:[%s10 + $0x8] sm:$0xff]
    %v516 = vld [vmem:[%s10 + $0x10] sm:$0xff]
    %v517 = vld [vmem:[%s10 + $0x18] sm:$0xff]
    %519 = vset.pattern.permute.xlu0 0
    %520 = vperm.xlu0 %519, %v514
    %v521 = vpop.permute.xlu0 %520
    %524 = vset.pattern.permute.xlu0 0
    %525 = vperm.xlu0 %524, %v515
    %v526 = vpop.permute.xlu0 %525
    %529 = vset.pattern.permute.xlu0 0
    %530 = vperm.xlu0 %529, %v516
    %v531 = vpop.permute.xlu0 %530
    %534 = vset.pattern.permute.xlu0 0
    %535 = vperm.xlu0 %534, %v517
    %v536 = vpop.permute.xlu0 %535
    %v542 = vunpack.c.l.b16 %v508
    %v543 = vunpack.c.l.b16 %v509
    %v544 = vunpack.c.l.b16 %v510
    %v545 = vunpack.c.l.b16 %v511
    %v546 = vpack.c.b16 %v543, %v542
    %v547 = vpack.c.b16 %v545, %v544
    %v549 = vsel %vm354, %v546, 0
    %v552 = vsel %vm354, %v547, 0
    %554 = vmatprep.subr.bf16.mxu0 0
    %555 = vmatpush1.bf16.msra.mxu0 %v512
    %556 = vmatprep.subr.bf16.mxu0 0
    %557 = vmatpush1.bf16.msra.mxu0 %v513
    %558 = vmatprep.subr.bf16.mxu0 0
    %559 = vmatpush1.bf16.msra.mxu0 0
    %560 = vmatprep.subr.bf16.mxu0 0
    %561 = vmatpush1.bf16.msra.mxu0 0
    %562 = vmatprep.subr.bf16.mxu0 0
    %563 = vmatpush1.bf16.msra.mxu0 0
    %564 = vmatprep.subr.bf16.mxu0 0
    %565 = vmatpush1.bf16.msra.mxu0 0
    %566 = vmatprep.subr.bf16.mxu0 0
    %567 = vmatpush1.bf16.msra.mxu0 0
    %568 = vmatprep.subr.bf16.mxu0 0
    %569 = vmatpush1.bf16.msra.mxu0 0
    %570 = vmatprep.subr.bf16.mxu0 0
    %571 = vmatpush1.bf16.msra.mxu0 0
    %572 = vmatprep.subr.bf16.mxu0 0
    %573 = vmatpush1.bf16.msra.mxu0 0
    %574 = vmatprep.subr.bf16.mxu0 0
    %575 = vmatpush1.bf16.msra.mxu0 0
    %576 = vmatprep.subr.bf16.mxu0 0
    %577 = vmatpush1.bf16.msra.mxu0 0
    %578 = vmatprep.subr.bf16.mxu0 0
    %579 = vmatpush1.bf16.msra.mxu0 0
    %580 = vmatprep.subr.bf16.mxu0 0
    %581 = vmatpush1.bf16.msra.mxu0 0
    %582 = vmatprep.subr.bf16.mxu0 0
    %583 = vmatpush1.bf16.msra.mxu0 0
    %584 = vmatprep.subr.bf16.mxu0 0
    %585 = vmatpush1.bf16.msra.mxu0 0
    %586 = vmatprep.mubr.bf16.mxu0 0
    %587 = vmatmul.mubr.bf16.gmra.mrb[0].mxu0 %v549
    %v588 = vpop.f32.mrb[0].mxu0
    %v589 = vadd.f32 %v521, %v588
    %v590 = vpop.f32.mrb[0].mxu0
    %v591 = vpop.f32.mrb[0].mxu0
    %v592 = vadd.f32 %v526, %v591
    %v593 = vpop.f32.mrb[0].mxu0
    %594 = vmatprep.mubr.bf16.mxu0 0
    %595 = vmatmul.mubr.bf16.gmra.mrb[0].mxu0 %v552
    %v596 = vpop.f32.mrb[0].mxu0
    %v597 = vadd.f32 %v531, %v596
    %v598 = vpop.f32.mrb[0].mxu0
    %v599 = vpop.f32.mrb[0].mxu0
    %v600 = vadd.f32 %v536, %v599
    %v601 = vpop.f32.mrb[0].mxu0
    %602 = vdwg.mxu0
    %v603 = vmax.f32 %v589, 0.0
    %v604 = vmax.f32 %v592, 0.0
    %v605 = vmax.f32 %v597, 0.0
    %v606 = vmax.f32 %v600, 0.0
    %v607 = vld [vmem:[%s11] sm:$0xf]
    %v608 = vld [vmem:[%s11 + $0x4] sm:$0xf]
    %v609 = vld [vmem:[%s11 + $0x8] sm:$0xf]
    %v610 = vld [vmem:[%s11 + $0xc] sm:$0xf]
    %v611 = vpack.c.bf16 %v604, %v603
    %v612 = vpack.c.bf16 %v606, %v605
    %v613 = vld [vmem:[%s12] sm:$0xff]
    %v614 = vld [vmem:[%s12 + $0x8] sm:$0xff]
    %v615 = vld [vmem:[%s12 + $0x10] sm:$0xff]
    %v616 = vld [vmem:[%s12 + $0x18] sm:$0xff]
    %618 = vset.pattern.permute.xlu0 0
    %619 = vperm.xlu0 %618, %v613
    %v620 = vpop.permute.xlu0 %619
    %623 = vset.pattern.permute.xlu0 0
    %624 = vperm.xlu0 %623, %v614
    %v625 = vpop.permute.xlu0 %624
    %628 = vset.pattern.permute.xlu0 0
    %629 = vperm.xlu0 %628, %v615
    %v630 = vpop.permute.xlu0 %629
    %633 = vset.pattern.permute.xlu0 0
    %634 = vperm.xlu0 %633, %v616
    %v635 = vpop.permute.xlu0 %634
    %v641 = vunpack.c.l.b16 %v607
    %v642 = vunpack.c.l.b16 %v608
    %v643 = vunpack.c.l.b16 %v609
    %v644 = vunpack.c.l.b16 %v610
    %v645 = vpack.c.b16 %v642, %v641
    %v646 = vpack.c.b16 %v644, %v643
    %v648 = vsel %vm354, %v645, 0
    %v651 = vsel %vm354, %v646, 0
    %653 = vmatprep.subr.bf16.mxu0 0
    %654 = vmatpush1.bf16.msra.mxu0 %v611
    %655 = vmatprep.subr.bf16.mxu0 0
    %656 = vmatpush1.bf16.msra.mxu0 %v612
    %657 = vmatprep.subr.bf16.mxu0 0
    %658 = vmatpush1.bf16.msra.mxu0 0
    %659 = vmatprep.subr.bf16.mxu0 0
    %660 = vmatpush1.bf16.msra.mxu0 0
    %661 = vmatprep.subr.bf16.mxu0 0
    %662 = vmatpush1.bf16.msra.mxu0 0
    %663 = vmatprep.subr.bf16.mxu0 0
    %664 = vmatpush1.bf16.msra.mxu0 0
    %665 = vmatprep.subr.bf16.mxu0 0
    %666 = vmatpush1.bf16.msra.mxu0 0
    %667 = vmatprep.subr.bf16.mxu0 0
    %668 = vmatpush1.bf16.msra.mxu0 0
    %669 = vmatprep.subr.bf16.mxu0 0
    %670 = vmatpush1.bf16.msra.mxu0 0
    %671 = vmatprep.subr.bf16.mxu0 0
    %672 = vmatpush1.bf16.msra.mxu0 0
    %673 = vmatprep.subr.bf16.mxu0 0
    %674 = vmatpush1.bf16.msra.mxu0 0
    %675 = vmatprep.subr.bf16.mxu0 0
    %676 = vmatpush1.bf16.msra.mxu0 0
    %677 = vmatprep.subr.bf16.mxu0 0
    %678 = vmatpush1.bf16.msra.mxu0 0
    %679 = vmatprep.subr.bf16.mxu0 0
    %680 = vmatpush1.bf16.msra.mxu0 0
    %681 = vmatprep.subr.bf16.mxu0 0
    %682 = vmatpush1.bf16.msra.mxu0 0
    %683 = vmatprep.subr.bf16.mxu0 0
    %684 = vmatpush1.bf16.msra.mxu0 0
    %685 = vmatprep.mubr.bf16.mxu0 0
    %686 = vmatmul.mubr.bf16.gmra.mrb[0].mxu0 %v648
    %v687 = vpop.f32.mrb[0].mxu0
    %v688 = vadd.f32 %v620, %v687
    %v689 = vpop.f32.mrb[0].mxu0
    %v690 = vpop.f32.mrb[0].mxu0
    %v691 = vadd.f32 %v625, %v690
    %v692 = vpop.f32.mrb[0].mxu0
    %693 = vmatprep.mubr.bf16.mxu0 0
    %694 = vmatmul.mubr.bf16.gmra.mrb[0].mxu0 %v651
    %v695 = vpop.f32.mrb[0].mxu0
    %v696 = vadd.f32 %v630, %v695
    %v697 = vpop.f32.mrb[0].mxu0
    %v698 = vpop.f32.mrb[0].mxu0
    %v699 = vadd.f32 %v635, %v698
    %v700 = vpop.f32.mrb[0].mxu0
    %701 = vdwg.mxu0
    %v702 = vmax.f32 %v688, 0.0
    %v703 = vmax.f32 %v691, 0.0
    %v704 = vmax.f32 %v696, 0.0
    %v705 = vmax.f32 %v699, 0.0
    %v706 = vld [vmem:[%s13] sm:$0xf]
    %v707 = vpack.c.bf16 %v703, %v702
    %v708 = vpack.c.bf16 %v705, %v704
    %v709 = vld [vmem:[%s14] sm:$0xff]
    %711 = vset.pattern.permute.xlu0 0
    %712 = vperm.xlu0 %711, %v709
    %v713 = vpop.permute.xlu0 %712
    %v716 = vsel %vm354, %v706, 0
    %718 = vmatprep.subr.bf16.mxu0 0
    %719 = vmatpush1.bf16.msra.mxu0 %v707
    %720 = vmatprep.subr.bf16.mxu0 0
    %721 = vmatpush1.bf16.msra.mxu0 %v708
    %722 = vmatprep.subr.bf16.mxu0 0
    %723 = vmatpush1.bf16.msra.mxu0 0
    %724 = vmatprep.subr.bf16.mxu0 0
    %725 = vmatpush1.bf16.msra.mxu0 0
    %726 = vmatprep.subr.bf16.mxu0 0
    %727 = vmatpush1.bf16.msra.mxu0 0
    %728 = vmatprep.subr.bf16.mxu0 0
    %729 = vmatpush1.bf16.msra.mxu0 0
    %730 = vmatprep.subr.bf16.mxu0 0
    %731 = vmatpush1.bf16.msra.mxu0 0
    %732 = vmatprep.subr.bf16.mxu0 0
    %733 = vmatpush1.bf16.msra.mxu0 0
    %734 = vmatprep.subr.bf16.mxu0 0
    %735 = vmatpush1.bf16.msra.mxu0 0
    %736 = vmatprep.subr.bf16.mxu0 0
    %737 = vmatpush1.bf16.msra.mxu0 0
    %738 = vmatprep.subr.bf16.mxu0 0
    %739 = vmatpush1.bf16.msra.mxu0 0
    %740 = vmatprep.subr.bf16.mxu0 0
    %741 = vmatpush1.bf16.msra.mxu0 0
    %742 = vmatprep.subr.bf16.mxu0 0
    %743 = vmatpush1.bf16.msra.mxu0 0
    %744 = vmatprep.subr.bf16.mxu0 0
    %745 = vmatpush1.bf16.msra.mxu0 0
    %746 = vmatprep.subr.bf16.mxu0 0
    %747 = vmatpush1.bf16.msra.mxu0 0
    %748 = vmatprep.subr.bf16.mxu0 0
    %749 = vmatpush1.bf16.msra.mxu0 0
    %750 = vmatprep.mubr.bf16.mxu0 0
    %751 = vmatmul.mubr.bf16.gmra.mrb[0].mxu0 %v716
    %v752 = vpop.f32.mrb[0].mxu0
    %v753 = vadd.f32 %v713, %v752
    %v754 = vpop.f32.mrb[0].mxu0
    %v755 = vpop.f32.mrb[0].mxu0
    %v756 = vpop.f32.mrb[0].mxu0
    %757 = vdwg.mxu0
    %v758 = vtanh.pop %v753
    %v759 = vadd.f32 %v758, 1.0
    %v760 = vmul.f32 %v759, 6.0
    %v761 = vadd.f32 %v760, -10.0
    %v762 = vmul.f32 %v761, 1.442695
    %v763 = vpow.pop %v762
    %v765 = vrot.slane %v763, 4
    %v767 = vmul.f32 %v57, %v765
    %v768 = vadd.f32 %v753, %v767
    %v769 = vmul.f32 %v57, -0.5
    %v770 = vmul.f32 %v769, %v57
    %v772 = vrot.slane %v761, 4
    %v774 = vsub.f32 %v770, %v772
    %vm775 = vcmask 1043456
    %v776 = vsel %vm775, %v774, 0.0
    %v777 = vrot.slane %v776, 4
    %v778 = vadd.f32 %v776, %v777
    %v779 = vrot.slane %v778, 2
    %v780 = vadd.f32 %v778, %v779
    %v781 = vrot.slane %v780, 1
    %v782 = vadd.f32 %v780, %v781
    %v783 = vsub.f32 %v782, 3.675754
    %v784 = vtanh.pop %v768
    %v785 = vmul.f32 %v784, %v784
    %v786 = vsub.f32 1.0, %v785
    %v787 = vmax.f32 %v786, 0.0
    %v788 = vadd.f32 %v787, 1e-06
    %v789 = vlog2.pop %v788
    %v790 = vmul.f32 %v789, 0.6931472
    %v791 = vsel %vm775, %v790, 0.0
    %v792 = vrot.slane %v791, 4
    %v793 = vadd.f32 %v791, %v792
    %v794 = vrot.slane %v793, 2
    %v795 = vadd.f32 %v793, %v794
    %v796 = vrot.slane %v795, 1
    %v797 = vadd.f32 %v795, %v796
    %v798 = vsub.f32 %v783, %v797
    %v800 = vrot.slane %v784, 4
    %v802 = vsel %vm775, %v758, %v800
    %v803 = vsel %vm775, %v772, %v798
    %804 = vst [vmem:[#allocation2] sm:$0xff] %v802
    %805 = vst [vmem:[#allocation2 + $0x8] sm:$0xff] %v803
    // Predicated region
    $region62: #{tpu_custom_call.1} parent=1 // pred_check
      _
    $region63: #{tpu_custom_call.1} parent=1 // pred_check_branch
      %807 = sbr.rel (0) target = $region65
    $region64: #{tpu_custom_call.1} parent=1 // pred_region
      %s809 = ssub.s32 256, 256
      %810 = vsyncadd [#allocation3], %s809
      %s811 = sshll.u32 [#allocation2], 4
      %s812 = int_to_ptr.vmem [resolvable:$true] %s811
      %817 = dma.vmem_to_hbm [thread:$0]  %s812, 256, %s15, [#allocation3], 128, 128, 8
    $region65: #{tpu_custom_call.1} parent=1 // pred_fallthru
      _
    // Predicated region
    $region66: #{tpu_custom_call.1} parent=1 // pred_check
      _
    $region67: #{tpu_custom_call.1} parent=1 // pred_check_branch
      %819 = sbr.rel (0) target = $region69
    $region68: #{tpu_custom_call.1} parent=1 // pred_region
      %820 = dma.done [#allocation3], 256
    $region69: #{tpu_custom_call.1} parent=1 // pred_fallthru
      _
    %821 = vsyncpa [#allocation3], 1

</llo_original>
